<compile_context>
chip_gen: v7x
topology: tpu7x:2x2x1
jax: 0.10.0
libtpu: 0.0.40
codegen_flags: <defaults>
</compile_context>

<pallas_src>
import functools

import jax
import jax.numpy as jnp
import numpy as np
from jax.experimental import pallas as pl
from jax.experimental.pallas import tpu as pltpu

_TARGET_BLOCK_ELEMS = 256 * 1024   # ~1 MiB of f32 compute per input block


# ---------------------------------------------------------------------------
# Pallas kernel: per-(sample, sublane-row) sufficient statistics of the loss.
# ---------------------------------------------------------------------------
def _dice_bce_stats_kernel(x_ref, t_ref, sxt_ref, sxpt_ref, sb_ref,
                           *, d_sub, td, tpc, needs_mask):
    # x_ref/t_ref:  (N, SUB, TD) tile of the folded inputs/targets (native dtype).
    # s*_ref:       (1, N, SUB) resident per-core partial-statistic outputs (f32).
    j = pl.program_id(1)

    @pl.when(j == 0)
    def _():
        sxt_ref[...] = jnp.zeros_like(sxt_ref)
        sxpt_ref[...] = jnp.zeros_like(sxpt_ref)
        sb_ref[...] = jnp.zeros_like(sb_ref)

    # Upcast to f32 in-kernel; inputs are streamed in their native dtype.
    x = x_ref[...].astype(jnp.float32)
    t = t_ref[...].astype(jnp.float32)

    if needs_mask:
        # Zero out-of-bounds lanes (ragged tail / overhanging duplicate tiles) BEFORE the logs.
        col0 = (pl.program_id(0) * tpc + j) * td     # logical starting feature column
        lane = jax.lax.broadcasted_iota(jnp.int32, x.shape, 2)
        valid = lane < (d_sub - col0)
        x = jnp.where(valid, x, 0.0)
        t = jnp.where(valid, t, 0.0)

    # PyTorch nn.BCELoss clamps each log at -100 (also keeps masked x = t = 0 lanes exact).
    log_x = jnp.maximum(jnp.log(x), -100.0)
    log_1mx = jnp.maximum(jnp.log(1.0 - x), -100.0)
    bce_neg = log_1mx + t * (log_x - log_1mx)        # == -(per-element BCE)

    # Accumulate straight into the resident output blocks (written back once per core).
    sxt_ref[...] += jnp.sum(x * t, axis=2)[None]     # intersection
    sxpt_ref[...] += jnp.sum(x + t, axis=2)[None]    # sum(x) + sum(t), fused
    sb_ref[...] += jnp.sum(bce_neg, axis=2)[None]    # -(BCE sum)


# ---------------------------------------------------------------------------
# Wrapper
# ---------------------------------------------------------------------------
def dice_bce_loss(inputs, targets, smooth=1.0):
    n = inputs.shape[0]
    d = 1
    for s in inputs.shape[1:]:
        d *= int(s)

    # Fold each sample's features to (SUB, D/SUB) so the sublane dim of every block is dense.
    # TODO(synk): if D is odd (SUB == 1) the blocks are sublane-sparse; acceptable fallback.
    sub = next(s for s in (8, 4, 2, 1) if d % s == 0)
    d_sub = d // sub
    x3 = inputs.reshape(n, sub, d_sub)      # row-major split: free reshape, no HBM copy
    t3 = targets.reshape(n, sub, d_sub)

    # Lane tile: multiple of 128, ~_TARGET_BLOCK_ELEMS elements per block, never wider than the
    # (128-rounded-up) folded row length.
    d_sub_up = -(-d_sub // 128) * 128
    td = (_TARGET_BLOCK_ELEMS // (n * sub)) // 128 * 128
    td = max(128, min(d_sub_up, td))

    total_tiles = pl.cdiv(d_sub, td)
    ncore = 2 if total_tiles >= 2 else 1       # feeds both TensorCores on v7x
    tpc = pl.cdiv(total_tiles, ncore)          # feature tiles per core
    needs_mask = (ncore * tpc * td) != d_sub   # ragged tail and/or overhanging tiles

    if ncore * tpc == total_tiles:
        in_map = lambda p, j: (0, 0, p * tpc + j)
    else:
        # Clamp overhanging tiles onto the last real tile; the in-kernel mask zeroes them out.
        in_map = lambda p, j: (0, 0, jnp.minimum(p * tpc + j, total_tiles - 1))

    in_spec = pl.BlockSpec((n, sub, td), in_map)
    out_spec = pl.BlockSpec((1, n, sub), lambda p, j: (p, 0, 0))
    stat = jax.ShapeDtypeStruct((ncore, n, sub), jnp.float32)

    sxt_p, sxpt_p, sb_p = pl.pallas_call(
        functools.partial(_dice_bce_stats_kernel,
                          d_sub=d_sub, td=td, tpc=tpc, needs_mask=needs_mask),
        out_shape=(stat, stat, stat),
        grid_spec=pltpu.PrefetchScalarGridSpec(
            num_scalar_prefetch=0,
            grid=(ncore, tpc),
            in_specs=[in_spec, in_spec],
            out_specs=(out_spec, out_spec, out_spec),
        ),
        compiler_params=pltpu.CompilerParams(
            dimension_semantics=("parallel", "arbitrary"),
            vmem_limit_bytes=32 * 1024 * 1024,
        ),
    )(x3, t3)

    # Tiny finalize in plain JAX: a handful of scalar ops on (ncore, N, SUB) partials.
    sxt = jnp.sum(sxt_p, axis=(0, 2))          # per-sample sum(x * t)
    sxpt = jnp.sum(sxpt_p, axis=(0, 2))        # per-sample sum(x) + sum(t)
    sb = jnp.sum(sb_p)                         # sum of -(per-element BCE)
    dice = (2.0 * sxt + smooth) / (sxpt + smooth)
    dice_loss = 1.0 - jnp.sum(dice) / n
    bce = -sb / (n * d)                        # PyTorch BCELoss mean over all elements
    return 3.0 * bce + dice_loss


# ---------------------------------------------------------------------------
# Pure-JAX reference (mirrors the PyTorch DiceBCELoss forward)
# ---------------------------------------------------------------------------
def ref_dice_bce_loss(inputs, targets, smooth=1.0):
    x = inputs.astype(jnp.float32)
    t = targets.astype(jnp.float32)
    log_x = jnp.maximum(jnp.log(x), -100.0)
    log_1mx = jnp.maximum(jnp.log(1.0 - x), -100.0)
    bce = jnp.mean(-(t * log_x + (1.0 - t) * log_1mx))
    n = x.shape[0]
    xf = x.reshape(n, -1)
    tf = t.reshape(n, -1)
    intersection = jnp.sum(xf * tf, axis=1)
    dice = (2.0 * intersection + smooth) / (jnp.sum(xf, axis=1) + jnp.sum(tf, axis=1) + smooth)
    dice_loss = 1.0 - jnp.sum(dice) / n
    return 3.0 * bce + dice_loss


# ---------------------------------------------------------------------------
if __name__ == "__main__":
    loss_fn = jax.jit(dice_bce_loss)

    key = jax.random.PRNGKey(0)
    k1, k2, k3, k4 = jax.random.split(key, 4)

    # Test 1: f32 inputs, lane-aligned features (N=2, C=4, 16x16 -> D=1024).
    N, C, H, W = 2, 4, 16, 16
    x1 = jax.nn.sigmoid(jax.random.normal(k1, (N, C, H, W), jnp.float32))   # probs in (0,1)
    t1 = (jax.random.uniform(k2, (N, C, H, W)) > 0.5).astype(jnp.float32)   # binary masks
    out1 = jax.block_until_ready(loss_fn(x1, t1))
    ref1 = ref_dice_bce_loss(x1, t1)
    np.testing.assert_allclose(np.asarray(out1), np.asarray(ref1), rtol=1e-5, atol=1e-5)

    # Test 2: bf16 inputs (native-dtype streaming) with a ragged feature length (D=300),
    # exercising the in-kernel tail mask instead of any wrapper-side padding.
    N2, C2, H2, W2 = 2, 3, 10, 10
    x2 = jax.nn.sigmoid(jax.random.normal(k3, (N2, C2, H2, W2), jnp.float32)).astype(jnp.bfloat16)
    t2 = (jax.random.uniform(k4, (N2, C2, H2, W2)) > 0.5).astype(jnp.bfloat16)
    out2 = jax.block_until_ready(loss_fn(x2, t2))
    ref2 = ref_dice_bce_loss(x2, t2)
    np.testing.assert_allclose(np.asarray(out2), np.asarray(ref2), rtol=1e-5, atol=1e-5)

    print("KERNEL_OK")
</pallas_src>

<mosaic_0001>
module attributes {stable_mosaic.version = 11 : i64} {
  func.func @_dice_bce_stats_kernel(%arg0: i32, %arg1: i32, %arg2: memref<2x8x128xf32, #tpu.memory_space<vmem>>, %arg3: memref<2x8x128xf32, #tpu.memory_space<vmem>>, %arg4: memref<1x2x8xf32, #tpu.memory_space<vmem>>, %arg5: memref<1x2x8xf32, #tpu.memory_space<vmem>>, %arg6: memref<1x2x8xf32, #tpu.memory_space<vmem>>) attributes {dimension_semantics = [#tpu.dimension_semantics<parallel>, #tpu.dimension_semantics<arbitrary>], iteration_bounds = array<i64: 1, 1>, scalar_prefetch = 0 : i64, scratch_operands = 0 : i64, tpu.core_type = #tpu.core_type<tc>, window_params = [{transform_indices = @transform_0, window_bounds = array<i64: 2, 8, 128>}, {transform_indices = @transform_1, window_bounds = array<i64: 2, 8, 128>}, {transform_indices = @transform_2, window_bounds = array<i64: 1, 2, 8>}, {transform_indices = @transform_3, window_bounds = array<i64: 1, 2, 8>}, {transform_indices = @transform_4, window_bounds = array<i64: 1, 2, 8>}]} {
    %c0_i32 = arith.constant 0 : i32
    %0 = arith.cmpi eq, %arg1, %c0_i32 : i32
    %1 = arith.extui %0 : i1 to i32
    %c0_i32_0 = arith.constant 0 : i32
    %2 = arith.cmpi ne, %1, %c0_i32_0 : i32
    scf.if %2 {
      %cst_29 = arith.constant 0.000000e+00 : f32
      %33 = vector.broadcast %cst_29 : f32 to vector<1x2x8xf32>
      %c0_30 = arith.constant 0 : index
      %c0_31 = arith.constant 0 : index
      %c0_32 = arith.constant 0 : index
      %34 = vector.load %arg4[%c0_30, %c0_31, %c0_32] : memref<1x2x8xf32, #tpu.memory_space<vmem>>, vector<1x2x8xf32>
      tpu.vector_store %arg4[%c0_30, %c0_31, %c0_32], %33 {strides = array<i32>} : memref<1x2x8xf32, #tpu.memory_space<vmem>>, vector<1x2x8xf32>,
      %cst_33 = arith.constant 0.000000e+00 : f32
      %35 = vector.broadcast %cst_33 : f32 to vector<1x2x8xf32>
      %c0_34 = arith.constant 0 : index
      %c0_35 = arith.constant 0 : index
      %c0_36 = arith.constant 0 : index
      %36 = vector.load %arg5[%c0_34, %c0_35, %c0_36] : memref<1x2x8xf32, #tpu.memory_space<vmem>>, vector<1x2x8xf32>
      tpu.vector_store %arg5[%c0_34, %c0_35, %c0_36], %35 {strides = array<i32>} : memref<1x2x8xf32, #tpu.memory_space<vmem>>, vector<1x2x8xf32>,
      %cst_37 = arith.constant 0.000000e+00 : f32
      %37 = vector.broadcast %cst_37 : f32 to vector<1x2x8xf32>
      %c0_38 = arith.constant 0 : index
      %c0_39 = arith.constant 0 : index
      %c0_40 = arith.constant 0 : index
      %38 = vector.load %arg6[%c0_38, %c0_39, %c0_40] : memref<1x2x8xf32, #tpu.memory_space<vmem>>, vector<1x2x8xf32>
      tpu.vector_store %arg6[%c0_38, %c0_39, %c0_40], %37 {strides = array<i32>} : memref<1x2x8xf32, #tpu.memory_space<vmem>>, vector<1x2x8xf32>,
    } else {
    }
    %c0 = arith.constant 0 : index
    %c0_1 = arith.constant 0 : index
    %c0_2 = arith.constant 0 : index
    %3 = vector.load %arg2[%c0, %c0_1, %c0_2] : memref<2x8x128xf32, #tpu.memory_space<vmem>>, vector<2x8x128xf32>
    %c0_3 = arith.constant 0 : index
    %c0_4 = arith.constant 0 : index
    %c0_5 = arith.constant 0 : index
    %4 = vector.load %arg3[%c0_3, %c0_4, %c0_5] : memref<2x8x128xf32, #tpu.memory_space<vmem>>, vector<2x8x128xf32>
    %5 = math.log %3 : vector<2x8x128xf32>
    %cst = arith.constant -1.000000e+02 : f32
    %6 = vector.broadcast %cst : f32 to vector<2x8x128xf32>
    %7 = arith.maximumf %5, %6 : vector<2x8x128xf32>
    %cst_6 = arith.constant 1.000000e+00 : f32
    %8 = vector.broadcast %cst_6 : f32 to vector<2x8x128xf32>
    %9 = arith.subf %8, %3 : vector<2x8x128xf32>
    %10 = math.log %9 : vector<2x8x128xf32>
    %cst_7 = arith.constant -1.000000e+02 : f32
    %11 = vector.broadcast %cst_7 : f32 to vector<2x8x128xf32>
    %12 = arith.maximumf %10, %11 : vector<2x8x128xf32>
    %13 = arith.subf %7, %12 : vector<2x8x128xf32>
    %14 = arith.mulf %4, %13 : vector<2x8x128xf32>
    %15 = arith.addf %12, %14 : vector<2x8x128xf32>
    %c0_8 = arith.constant 0 : index
    %c0_9 = arith.constant 0 : index
    %c0_10 = arith.constant 0 : index
    %16 = vector.load %arg4[%c0_8, %c0_9, %c0_10] : memref<1x2x8xf32, #tpu.memory_space<vmem>>, vector<1x2x8xf32>
    %17 = arith.mulf %3, %4 : vector<2x8x128xf32>
    %cst_11 = arith.constant dense<0.000000e+00> : vector<2x8xf32>
    %18 = vector.multi_reduction <add>, %17, %cst_11 [2] : vector<2x8x128xf32> to vector<2x8xf32>
    %19 = vector.shape_cast %18 : vector<2x8xf32> to vector<1x2x8xf32>
    %20 = arith.addf %16, %19 : vector<1x2x8xf32>
    %c0_12 = arith.constant 0 : index
    %c0_13 = arith.constant 0 : index
    %c0_14 = arith.constant 0 : index
    %21 = vector.load %arg4[%c0_12, %c0_13, %c0_14] : memref<1x2x8xf32, #tpu.memory_space<vmem>>, vector<1x2x8xf32>
    tpu.vector_store %arg4[%c0_12, %c0_13, %c0_14], %20 {strides = array<i32>} : memref<1x2x8xf32, #tpu.memory_space<vmem>>, vector<1x2x8xf32>,
    %c0_15 = arith.constant 0 : index
    %c0_16 = arith.constant 0 : index
    %c0_17 = arith.constant 0 : index
    %22 = vector.load %arg5[%c0_15, %c0_16, %c0_17] : memref<1x2x8xf32, #tpu.memory_space<vmem>>, vector<1x2x8xf32>
    %23 = arith.addf %3, %4 : vector<2x8x128xf32>
    %cst_18 = arith.constant dense<0.000000e+00> : vector<2x8xf32>
    %24 = vector.multi_reduction <add>, %23, %cst_18 [2] : vector<2x8x128xf32> to vector<2x8xf32>
    %25 = vector.shape_cast %24 : vector<2x8xf32> to vector<1x2x8xf32>
    %26 = arith.addf %22, %25 : vector<1x2x8xf32>
    %c0_19 = arith.constant 0 : index
    %c0_20 = arith.constant 0 : index
    %c0_21 = arith.constant 0 : index
    %27 = vector.load %arg5[%c0_19, %c0_20, %c0_21] : memref<1x2x8xf32, #tpu.memory_space<vmem>>, vector<1x2x8xf32>
    tpu.vector_store %arg5[%c0_19, %c0_20, %c0_21], %26 {strides = array<i32>} : memref<1x2x8xf32, #tpu.memory_space<vmem>>, vector<1x2x8xf32>,
    %c0_22 = arith.constant 0 : index
    %c0_23 = arith.constant 0 : index
    %c0_24 = arith.constant 0 : index
    %28 = vector.load %arg6[%c0_22, %c0_23, %c0_24] : memref<1x2x8xf32, #tpu.memory_space<vmem>>, vector<1x2x8xf32>
    %cst_25 = arith.constant dense<0.000000e+00> : vector<2x8xf32>
    %29 = vector.multi_reduction <add>, %15, %cst_25 [2] : vector<2x8x128xf32> to vector<2x8xf32>
    %30 = vector.shape_cast %29 : vector<2x8xf32> to vector<1x2x8xf32>
    %31 = arith.addf %28, %30 : vector<1x2x8xf32>
    %c0_26 = arith.constant 0 : index
    %c0_27 = arith.constant 0 : index
    %c0_28 = arith.constant 0 : index
    %32 = vector.load %arg6[%c0_26, %c0_27, %c0_28] : memref<1x2x8xf32, #tpu.memory_space<vmem>>, vector<1x2x8xf32>
    tpu.vector_store %arg6[%c0_26, %c0_27, %c0_28], %31 {strides = array<i32>} : memref<1x2x8xf32, #tpu.memory_space<vmem>>, vector<1x2x8xf32>,
    return
  }
  func.func @transform_0(%arg0: i32, %arg1: i32) -> (i32, i32, i32) {
    %c1_i32 = arith.constant 1 : i32
    %0 = arith.muli %arg0, %c1_i32 : i32
    %1 = arith.addi %0, %arg1 : i32
    %c0_i32 = arith.constant 0 : i32
    %c0_i32_0 = arith.constant 0 : i32
    %c0_i32_1 = arith.constant 0 : i32
    return %c0_i32, %c0_i32_0, %1 : i32, i32, i32
  }
  func.func @transform_1(%arg0: i32, %arg1: i32) -> (i32, i32, i32) {
    %c1_i32 = arith.constant 1 : i32
    %0 = arith.muli %arg0, %c1_i32 : i32
    %1 = arith.addi %0, %arg1 : i32
    %c0_i32 = arith.constant 0 : i32
    %c0_i32_0 = arith.constant 0 : i32
    %c0_i32_1 = arith.constant 0 : i32
    return %c0_i32, %c0_i32_0, %1 : i32, i32, i32
  }
  func.func @transform_2(%arg0: i32, %arg1: i32) -> (i32, i32, i32) {
    %c0_i32 = arith.constant 0 : i32
    %c0_i32_0 = arith.constant 0 : i32
    %c0_i32_1 = arith.constant 0 : i32
    return %arg0, %c0_i32, %c0_i32_0 : i32, i32, i32
  }
  func.func @transform_3(%arg0: i32, %arg1: i32) -> (i32, i32, i32) {
    %c0_i32 = arith.constant 0 : i32
    %c0_i32_0 = arith.constant 0 : i32
    %c0_i32_1 = arith.constant 0 : i32
    return %arg0, %c0_i32, %c0_i32_0 : i32, i32, i32
  }
  func.func @transform_4(%arg0: i32, %arg1: i32) -> (i32, i32, i32) {
    %c0_i32 = arith.constant 0 : i32
    %c0_i32_0 = arith.constant 0 : i32
    %c0_i32_1 = arith.constant 0 : i32
    return %arg0, %c0_i32, %c0_i32_0 : i32, i32, i32
  }
}

</mosaic_0001>

<llo_original>
// kernel: dice_bce_loss.1
$region0: #{dice_bce_loss.1}
  #allocation0 [shape = 'u32[]', space=smem, size = 0x4, offset = 0x4, fixed_abs, tag = 'smem constant byte address 0x4 - core index']
  #allocation1 [shape = 'u32[144,128]{1,0:T(1,128)}', space=vmem, size = 0x12000, scoped, tag = 'internal scratch']
  %s0 = inlined_call_operand.vmem [shape: f32[2,8,128], index: 0, kind: input, shape index: {}]
  %s1 = inlined_call_operand.vmem [shape: f32[2,8,128], index: 1, kind: input, shape index: {}]
  %s2 = inlined_call_operand.vmem [shape: f32[1,2,8], index: 2, kind: output, shape index: {0}]
  %s3 = inlined_call_operand.vmem [shape: f32[1,2,8], index: 3, kind: output, shape index: {1}]
  %s4 = inlined_call_operand.vmem [shape: f32[1,2,8], index: 4, kind: output, shape index: {2}]
  %5 = xla_tuple %s2, %s3, %s4
  %s6 = sld [smem:[#allocation0]]
  $region38: #{dice_bce_loss.1} parent=0
    _
  %s8 = ssub.s32 1, %s6
  %s9 = scalar_select 0, %s8, %s6
  // Predicated region
  $region2: #{dice_bce_loss.1} parent=0 // pred_check
    _
  $region3: #{dice_bce_loss.1} parent=0 // pred_check_branch
    %11 = sbr.rel (0) target = $region5
  $region4: #{dice_bce_loss.1} parent=0 // pred_region
    %s12 = sadd.s32 0, 0
    %p13 = scmp.lt.s32.totalorder %s12, 0
    %s14 = scalar_select %p13, %s12, 0
    %s15 = smul.addr %s14, 8
    %s16 = scalar_lea.vmem %s0, %s15
    %s17 = sadd.s32 0, 0
  $region5: #{dice_bce_loss.1} parent=0 // pred_fallthru
    _
  // Predicated region
  $region6: #{dice_bce_loss.1} parent=0 // pred_check
    _
  $region7: #{dice_bce_loss.1} parent=0 // pred_check_branch
    %19 = sbr.rel (0) target = $region9
  $region8: #{dice_bce_loss.1} parent=0 // pred_region
    %s20 = sadd.s32 0, 0
    %p21 = scmp.lt.s32.totalorder %s20, 0
    %s22 = scalar_select %p21, %s20, 0
    %s23 = smul.addr %s22, 8
    %s24 = scalar_lea.vmem %s1, %s23
    %s25 = sadd.s32 0, 0
  $region9: #{dice_bce_loss.1} parent=0 // pred_fallthru
    _
  %s26 = sadd.s32 0, 0
  %p27 = scmp.lt.s32.totalorder %s26, 0
  %s28 = scalar_select %p27, %s26, 0
  %s29 = smul.addr %s28, 8
  %s30 = scalar_lea.vmem %s0, %s29
  %s31 = sadd.s32 0, 0
  %p32 = scmp.lt.s32.totalorder %s31, 0
  %s33 = scalar_select %p32, %s31, 0
  %s34 = smul.addr %s33, 8
  %s35 = scalar_lea.vmem %s1, %s34
  %s36 = sadd.s32 0, 0
  %p37 = scmp.lt.s32.totalorder %s36, 0
  %s38 = scalar_select %p37, %s36, 0
  %s39 = smul.addr %s38, 8
  %s40 = scalar_lea.vmem %s0, %s39
  %s41 = sadd.s32 0, 0
  %s42 = sadd.s32 0, 0
  %p43 = scmp.lt.s32.totalorder %s42, 0
  %s44 = scalar_select %p43, %s42, 0
  %s45 = smul.addr %s44, 8
  %s46 = scalar_lea.vmem %s1, %s45
  %s47 = sadd.s32 0, 0
  %p48 = scmp.eq.s32.totalorder 0, 0
  // Predicated region
  $region10: #{dice_bce_loss.1} parent=0 // pred_check
    %p49 = pneg %p48
  $region11: #{dice_bce_loss.1} parent=0 // pred_check_branch
    %51 = sbr.rel (%p49) target = $region13
  $region12: #{dice_bce_loss.1} parent=0 // pred_region
    %vm52 = vcmask 58368
    %53 = vst.msk [vmem:[%s2] sm:$0x3] %vm52, 0.0
    %54 = vst.msk [vmem:[%s3] sm:$0x3] %vm52, 0.0
    %55 = vst.msk [vmem:[%s4] sm:$0x3] %vm52, 0.0
  $region13: #{dice_bce_loss.1} parent=0 // pred_fallthru
    _
  %v56 = vld [vmem:[%s40] sm:$0xff]
  %v57 = vld [vmem:[%s40 + $0x8] sm:$0xff]
  %v58 = vld [vmem:[%s46] sm:$0xff]
  %v59 = vld [vmem:[%s46 + $0x8] sm:$0xff]
  %v60 = vlog2.pop %v56
  %v61 = vmul.f32 %v60, 0.6931472
  %v62 = vlog2.pop %v57
  %v63 = vmul.f32 %v62, 0.6931472
  %v64 = vmax.f32 %v61, -100.0
  %v65 = vmax.f32 %v63, -100.0
  %v66 = vsub.f32 1.0, %v56
  %v67 = vsub.f32 1.0, %v57
  %v68 = vlog2.pop %v66
  %v69 = vmul.f32 %v68, 0.6931472
  %v70 = vlog2.pop %v67
  %v71 = vmul.f32 %v70, 0.6931472
  %v72 = vmax.f32 %v69, -100.0
  %v73 = vmax.f32 %v71, -100.0
  %v74 = vsub.f32 %v64, %v72
  %v75 = vsub.f32 %v65, %v73
  %v76 = vmul.f32 %v58, %v74
  %v77 = vmul.f32 %v59, %v75
  %v78 = vadd.f32 %v72, %v76
  %v79 = vadd.f32 %v73, %v77
  %v80 = vld [vmem:[%s2] sm:$0x3]
  %v81 = vmul.f32 %v56, %v58
  %v82 = vmul.f32 %v57, %v59
  %83 = vadd.xlane.f32.xlu0 %v81
  %v84 = vpop.xlane.xlu0 %83
  %85 = vadd.xlane.f32.xlu0 %v82
  %v86 = vpop.xlane.xlu0 %85
  %v89 = vlaneseq
  %v90 = vand.u32 %v89, 127
  %v91 = vlaneseq
  %v92 = vshrl.u32 %v91, 7
  %v93 = vsub.s32 %v90, %v92
  %v94 = vrot.slane %v84, %v93
  %v95 = vlaneseq
  %v96 = vshrl.u32 %v95, 7
  %v97 = vsub.s32 %v90, %v96
  %v98 = vrot.slane %v86, %v97
  %vm99 = vcmask 1041409
  %v100 = vsel %vm99, %v98, %v94
  %v102 = vadd.f32 %v80, %v100
  %vm103 = vcmask 58368
  %104 = vst.msk [vmem:[%s2] sm:$0x3] %vm103, %v102
  %v105 = vld [vmem:[%s3] sm:$0x3]
  %v106 = vadd.f32 %v56, %v58
  %v107 = vadd.f32 %v57, %v59
  %108 = vadd.xlane.f32.xlu0 %v106
  %v109 = vpop.xlane.xlu0 %108
  %110 = vadd.xlane.f32.xlu0 %v107
  %v111 = vpop.xlane.xlu0 %110
  %v114 = vlaneseq
  %v115 = vshrl.u32 %v114, 7
  %v116 = vsub.s32 %v90, %v115
  %v117 = vrot.slane %v109, %v116
  %v118 = vlaneseq
  %v119 = vshrl.u32 %v118, 7
  %v120 = vsub.s32 %v90, %v119
  %v121 = vrot.slane %v111, %v120
  %v122 = vsel %vm99, %v121, %v117
  %v124 = vadd.f32 %v105, %v122
  %125 = vst.msk [vmem:[%s3] sm:$0x3] %vm103, %v124
  %v126 = vld [vmem:[%s4] sm:$0x3]
  %127 = vadd.xlane.f32.xlu0 %v78
  %v128 = vpop.xlane.xlu0 %127
  %129 = vadd.xlane.f32.xlu0 %v79
  %v130 = vpop.xlane.xlu0 %129
  %v133 = vlaneseq
  %v134 = vshrl.u32 %v133, 7
  %v135 = vsub.s32 %v90, %v134
  %v136 = vrot.slane %v128, %v135
  %v137 = vlaneseq
  %v138 = vshrl.u32 %v137, 7
  %v139 = vsub.s32 %v90, %v138
  %v140 = vrot.slane %v130, %v139
  %v141 = vsel %vm99, %v140, %v136
  %v143 = vadd.f32 %v126, %v141
  %144 = vst.msk [vmem:[%s4] sm:$0x3] %vm103, %v143
  // Predicated region
  $region14: #{dice_bce_loss.1} parent=0 // pred_check
    _
  $region15: #{dice_bce_loss.1} parent=0 // pred_check_branch
    %146 = sbr.rel (0) target = $region17
  $region16: #{dice_bce_loss.1} parent=0 // pred_region
    _
  $region17: #{dice_bce_loss.1} parent=0 // pred_fallthru
    _
  // Predicated region
  $region18: #{dice_bce_loss.1} parent=0 // pred_check
    _
  $region19: #{dice_bce_loss.1} parent=0 // pred_check_branch
    %148 = sbr.rel (0) target = $region21
  $region20: #{dice_bce_loss.1} parent=0 // pred_region
    _
  $region21: #{dice_bce_loss.1} parent=0 // pred_fallthru
    _
  // Predicated region
  $region22: #{dice_bce_loss.1} parent=0 // pred_check
    _
  $region23: #{dice_bce_loss.1} parent=0 // pred_check_branch
    %150 = sbr.rel (0) target = $region25
  $region24: #{dice_bce_loss.1} parent=0 // pred_region
    _
  $region25: #{dice_bce_loss.1} parent=0 // pred_fallthru
    _
  // Predicated region
  $region26: #{dice_bce_loss.1} parent=0 // pred_check
    _
  $region27: #{dice_bce_loss.1} parent=0 // pred_check_branch
    %152 = sbr.rel (0) target = $region29
  $region28: #{dice_bce_loss.1} parent=0 // pred_region
    _
  $region29: #{dice_bce_loss.1} parent=0 // pred_fallthru
    _
  // Predicated region
  $region30: #{dice_bce_loss.1} parent=0 // pred_check
    _
  $region31: #{dice_bce_loss.1} parent=0 // pred_check_branch
    %154 = sbr.rel (0) target = $region33
  $region32: #{dice_bce_loss.1} parent=0 // pred_region
    _
  $region33: #{dice_bce_loss.1} parent=0 // pred_fallthru
    _
  // Predicated region
  $region34: #{dice_bce_loss.1} parent=0 // pred_check
    _
  $region35: #{dice_bce_loss.1} parent=0 // pred_check_branch
    %156 = sbr.rel (0) target = $region37
  $region36: #{dice_bce_loss.1} parent=0 // pred_region
    _
  $region37: #{dice_bce_loss.1} parent=0 // pred_fallthru
    _

</llo_original>
